<compile_context>
chip_gen: v7x
topology: tpu7x:2x2x1
jax: 0.10.0
libtpu: 0.0.40
codegen_flags: <defaults>
</compile_context>

<pallas_src>
import functools
import math

import jax
import jax.numpy as jnp
from jax.experimental import pallas as pl
from jax.experimental.pallas import tpu as pltpu

LANE = 128
MAX_TK = 2048


def _fused_matmul_bias_relu_kernel(x_ref, w_ref, b_ref, o_ref, acc_ref):
    """One (tm, tk) @ (tk, tn) MXU step of out = relu(x @ w + b).

    Grid = (M_tiles, N_tiles, K_tiles); the contraction axis is last.  acc_ref
    is an f32 VMEM scratch accumulator (bias-initialized at k == 0); the bf16
    output block is written once at the last k with the ReLU epilogue.
    """
    k = pl.program_id(2)

    @pl.when(k == 0)
    def _():
        acc_ref[...] = jnp.broadcast_to(b_ref[...], acc_ref.shape)

    acc_ref[...] += jnp.dot(
        x_ref[...], w_ref[...], preferred_element_type=jnp.float32
    )

    @pl.when(k == pl.num_programs(2) - 1)
    def _():
        o_ref[...] = jnp.maximum(acc_ref[...], 0.0).astype(o_ref.dtype)


@functools.lru_cache(maxsize=1)
def _device_info():
    """(vmem_capacity_bytes, has_two_tensorcores) with conservative fallbacks."""
    kind = ""
    try:
        kind = jax.devices()[0].device_kind.lower()
    except Exception:
        pass
    multi_tc = "v7" in kind
    vmem_cap = 64 * 1024 * 1024            # conservative default (v7x per-TC VMEM)
    try:
        vmem_cap = int(pltpu.get_tpu_info().vmem_capacity_bytes)
    except Exception:
        if kind and not multi_tc:
            vmem_cap = 128 * 1024 * 1024   # v5e / v6e
    return vmem_cap, multi_tc


def _pick_tile(dim, candidates):
    for c in candidates:
        if dim >= c and dim % c == 0:
            return c
    return dim  # full-extent block (always legal)


def _working_set_bytes(tm, tn, tk):
    # double-buffered bf16 x / bf16 w / f32 bias / bf16 out tiles + f32 scratch
    return 2 * (tm * tk * 2 + tk * tn * 2 + tn * 4 + tm * tn * 2) + tm * tn * 4


def _fused_matmul_bias_relu(x, w, b):
    """out = relu(x @ w + b); x, w bf16, f32 accumulation, bf16 output."""
    M, K = x.shape
    Kw, N = w.shape
    assert K == Kw and b.shape == (1, N) and N % LANE == 0

    vmem_cap, multi_tc = _device_info()
    vmem_limit = min(vmem_cap // 2, 64 * 1024 * 1024)
    budget = int(0.7 * vmem_limit)

    # tm: multiples of 16 only (bf16 packs 2 rows / sublane); up to 512 to cut
    # weight re-streaming (HBM weight traffic scales as 1/tm).
    tm = _pick_tile(M, (512, 256, 128, 64, 32, 16))
    tn = _pick_tile(N, (512, 256, 128))  # N is padded to a multiple of 128

    # tk: full K when small; otherwise a clean divisor <= 2048, padding K to a
    # multiple of 256 if no such divisor exists (zeros contribute nothing).
    if K <= MAX_TK:
        tk = K
    else:
        tk = _pick_tile(K, (2048, 1024, 512, 256))
        if tk == K:
            Kp = ((K + 255) // 256) * 256
            x = jnp.pad(x, ((0, 0), (0, Kp - K)))
            w = jnp.pad(w, ((0, Kp - K), (0, 0)))
            K = Kp
            tk = _pick_tile(K, (2048, 1024, 512, 256))

    # v7x: make sure the second TensorCore gets at least one (i, j) block.
    if multi_tc and (M // tm) * (N // tn) < 2:
        if tn >= 256 and tn % 256 == 0:
            tn //= 2
        elif tm >= 32 and tm % 32 == 0:
            tm //= 2

    # Defensive shrink so the double-buffered working set fits the VMEM budget.
    while _working_set_bytes(tm, tn, tk) > budget and tm >= 32 and tm % 32 == 0:
        tm //= 2
    while _working_set_bytes(tm, tn, tk) > budget and tn >= 256 and tn % 256 == 0:
        tn //= 2

    grid = (M // tm, N // tn, K // tk)

    cost = pl.CostEstimate(
        flops=2 * M * K * N,
        transcendentals=0,
        bytes_accessed=(M * K * 2 + K * N * 2 + N * 4 + M * N * 2),
    )

    return pl.pallas_call(
        _fused_matmul_bias_relu_kernel,
        out_shape=jax.ShapeDtypeStruct((M, N), jnp.bfloat16),
        grid_spec=pltpu.PrefetchScalarGridSpec(
            num_scalar_prefetch=0,
            grid=grid,
            in_specs=[
                pl.BlockSpec((tm, tk), lambda i, j, k: (i, k)),
                pl.BlockSpec((tk, tn), lambda i, j, k: (k, j)),
                pl.BlockSpec((1, tn), lambda i, j, k: (0, j)),
            ],
            out_specs=pl.BlockSpec((tm, tn), lambda i, j, k: (i, j)),
            scratch_shapes=[pltpu.VMEM((tm, tn), jnp.float32)],
        ),
        compiler_params=pltpu.CompilerParams(
            dimension_semantics=("parallel", "parallel", "arbitrary"),
            vmem_limit_bytes=vmem_limit,
        ),
        cost_estimate=cost,
    )(x, w, b)


@functools.partial(jax.jit, static_argnames=("n_out",))
def _pnn_forward(xs, w_cat, bias, *, n_out):
    # Single feature-axis concat feeds one fused contraction of depth K*n_in.
    x_cat = jnp.concatenate([x.astype(jnp.bfloat16) for x in xs], axis=-1)
    B = x_cat.shape[0]
    pad_m = (-B) % 8                       # sublane-align odd batch sizes
    if pad_m:
        x_cat = jnp.pad(x_cat, ((0, pad_m), (0, 0)))
    out_padded = _fused_matmul_bias_relu(x_cat, w_cat, bias)
    return out_padded[:B, :n_out]


class PNNLinearBlockPallas:
    """JAX/Pallas port of PNNLinearBlock: relu(W x_last + sum_i U_i x_i)."""

    def __init__(self, col, depth, n_in, n_out, key):
        self.col = col
        self.depth = depth
        self.n_in = n_in
        self.n_out = n_out
        self.n_lateral = col if depth > 0 else 0
        n_linears = self.n_lateral + 1

        # Pad the output feature dim to a lane-dense multiple of 128.
        self.n_out_p = ((n_out + LANE - 1) // LANE) * LANE
        pad_n = self.n_out_p - n_out

        # Deterministic init mimicking nn.Linear default U(-1/sqrt(n_in), +).
        bound = 1.0 / math.sqrt(n_in)
        keys = jax.random.split(key, 2 * n_linears)
        Ws, bs = [], []
        for i in range(n_linears):
            Ws.append(jax.random.uniform(
                keys[2 * i], (n_in, n_out), jnp.float32, -bound, bound))
            bs.append(jax.random.uniform(
                keys[2 * i + 1], (n_out,), jnp.float32, -bound, bound))

        # Order: laterals u_0..u_{col-1} first (matches zip(self.u, inputs)),
        # current-column weight W last.
        self._Ws_f32 = Ws          # kept for the pure-JAX reference
        self._bs_f32 = bs

        def pad_w(W):
            return jnp.pad(W, ((0, 0), (0, pad_n))).astype(jnp.bfloat16)

        def pad_b(b):
            return jnp.pad(b, (0, pad_n)).astype(jnp.float32)

        self._w_parts = [pad_w(W) for W in Ws]   # each (n_in, n_out_p) bf16
        self._b_parts = [pad_b(b) for b in bs]   # each (n_out_p,)      f32

        # Memoized fused (w_cat, bias) per number of laterals actually used.
        self._variant_cache = {}
        self._fused_params(self.n_lateral)       # pre-build the common case

    def _fused_params(self, n_used):
        params = self._variant_cache.get(n_used)
        if params is None:
            w_cat = jnp.concatenate(
                self._w_parts[:n_used] + [self._w_parts[-1]], axis=0)
            bias = functools.reduce(
                jnp.add, self._b_parts[:n_used] + [self._b_parts[-1]]
            ).reshape(1, self.n_out_p)
            params = (w_cat, bias)
            self._variant_cache[n_used] = params
        return params

    def __call__(self, inputs):
        if not isinstance(inputs, list):
            inputs = [inputs]
        # zip(self.u, inputs) truncation semantics from the PyTorch module.
        n_used = min(self.n_lateral, len(inputs))
        xs = tuple(inputs[:n_used]) + (inputs[-1],)
        w_cat, bias = self._fused_params(n_used)
        return _pnn_forward(xs, w_cat, bias, n_out=self.n_out)

    def reference(self, inputs):
        """Pure-JAX f32 reference mirroring the PyTorch forward."""
        if not isinstance(inputs, list):
            inputs = [inputs]
        acc = inputs[-1] @ self._Ws_f32[-1] + self._bs_f32[-1]
        n_used = min(self.n_lateral, len(inputs))
        for i in range(n_used):
            acc = acc + inputs[i] @ self._Ws_f32[i] + self._bs_f32[i]
        return jnp.maximum(acc, 0.0)


if __name__ == "__main__":
    key = jax.random.PRNGKey(0)
    k1, k2, kx1, kx2 = jax.random.split(key, 4)

    # Case 1: col=2, depth=1, one input per previous column + current column.
    col, depth, B, n_in, n_out = 2, 1, 8, 32, 64
    block = PNNLinearBlockPallas(col, depth, n_in, n_out, k1)
    xkeys = jax.random.split(kx1, col + 1)
    inputs = [jax.random.normal(xkeys[i], (B, n_in), jnp.float32)
              for i in range(col + 1)]
    out = jax.block_until_ready(block(inputs))
    ref = block.reference(inputs)
    assert out.shape == (B, n_out), out.shape
    # bf16 matmul operands + bf16 output vs. f32 reference -> relaxed tolerance.
    assert jnp.allclose(out, ref, atol=3e-2, rtol=3e-2), (
        float(jnp.max(jnp.abs(out.astype(jnp.float32) - ref))))

    # Case 2: odd batch, non-128 n_out, fewer inputs than lateral columns
    # (exercises zip truncation, memoized variant params, M/N padding).
    col2, depth2, B2, n_in2, n_out2 = 3, 2, 5, 16, 40
    block2 = PNNLinearBlockPallas(col2, depth2, n_in2, n_out2, k2)
    xkeys2 = jax.random.split(kx2, 2)
    inputs2 = [jax.random.normal(xkeys2[i], (B2, n_in2), jnp.float32)
               for i in range(2)]
    out2 = jax.block_until_ready(block2(inputs2))
    ref2 = block2.reference(inputs2)
    assert out2.shape == (B2, n_out2), out2.shape
    assert jnp.allclose(out2, ref2, atol=3e-2, rtol=3e-2), (
        float(jnp.max(jnp.abs(out2.astype(jnp.float32) - ref2))))

    print("KERNEL_OK")
</pallas_src>

<mosaic_0001>
module attributes {stable_mosaic.version = 11 : i64} {
  func.func @_fused_matmul_bias_relu_kernel(%arg0: i32, %arg1: i32, %arg2: i32, %arg3: memref<8x96xbf16, #tpu.memory_space<vmem>>, %arg4: memref<96x128xbf16, #tpu.memory_space<vmem>>, %arg5: memref<1x128xf32, #tpu.memory_space<vmem>>, %arg6: memref<8x128xbf16, #tpu.memory_space<vmem>>, %arg7: memref<8x128xf32, #tpu.memory_space<vmem>>) attributes {dimension_semantics = [#tpu.dimension_semantics<parallel>, #tpu.dimension_semantics<parallel>, #tpu.dimension_semantics<arbitrary>], iteration_bounds = array<i64: 1, 1, 1>, scalar_prefetch = 0 : i64, scratch_operands = 1 : i64, tpu.core_type = #tpu.core_type<tc>, window_params = [{transform_indices = @transform_0, window_bounds = array<i64: 8, 96>}, {transform_indices = @transform_1, window_bounds = array<i64: 96, 128>}, {transform_indices = @transform_2, window_bounds = array<i64: 1, 128>}, {transform_indices = @transform_3, window_bounds = array<i64: 8, 128>}]} {
    %c0_i32 = arith.constant 0 : i32
    %0 = arith.cmpi eq, %arg2, %c0_i32 : i32
    %1 = arith.extui %0 : i1 to i32
    %c0_i32_0 = arith.constant 0 : i32
    %2 = arith.cmpi ne, %1, %c0_i32_0 : i32
    scf.if %2 {
      %c0_10 = arith.constant 0 : index
      %c0_11 = arith.constant 0 : index
      %12 = vector.load %arg5[%c0_10, %c0_11] : memref<1x128xf32, #tpu.memory_space<vmem>>, vector<1x128xf32>
      %13 = vector.shape_cast %12 : vector<1x128xf32> to vector<1x128xf32>
      %14 = vector.broadcast %13 : vector<1x128xf32> to vector<8x128xf32>
      %c0_12 = arith.constant 0 : index
      %c0_13 = arith.constant 0 : index
      %15 = vector.load %arg7[%c0_12, %c0_13] : memref<8x128xf32, #tpu.memory_space<vmem>>, vector<8x128xf32>
      tpu.vector_store %arg7[%c0_12, %c0_13], %14 {strides = array<i32>} : memref<8x128xf32, #tpu.memory_space<vmem>>, vector<8x128xf32>,
    } else {
    }
    %c0 = arith.constant 0 : index
    %c0_1 = arith.constant 0 : index
    %3 = vector.load %arg7[%c0, %c0_1] : memref<8x128xf32, #tpu.memory_space<vmem>>, vector<8x128xf32>
    %c0_2 = arith.constant 0 : index
    %c0_3 = arith.constant 0 : index
    %4 = vector.load %arg3[%c0_2, %c0_3] : memref<8x96xbf16, #tpu.memory_space<vmem>>, vector<8x96xbf16>
    %c0_4 = arith.constant 0 : index
    %c0_5 = arith.constant 0 : index
    %5 = vector.load %arg4[%c0_4, %c0_5] : memref<96x128xbf16, #tpu.memory_space<vmem>>, vector<96x128xbf16>
    %cst = arith.constant dense<0.000000e+00> : vector<8x128xf32>
    %6 = tpu.matmul %4, %5, %cst {dimension_numbers = #tpu.dot_dimension_numbers<[1], [0], [0], [1], [0, 0, 1, 1], [], []>} : vector<8x96xbf16>, vector<96x128xbf16>, vector<8x128xf32> -> vector<8x128xf32>
    %7 = arith.addf %3, %6 : vector<8x128xf32>
    %c0_6 = arith.constant 0 : index
    %c0_7 = arith.constant 0 : index
    %8 = vector.load %arg7[%c0_6, %c0_7] : memref<8x128xf32, #tpu.memory_space<vmem>>, vector<8x128xf32>
    tpu.vector_store %arg7[%c0_6, %c0_7], %7 {strides = array<i32>} : memref<8x128xf32, #tpu.memory_space<vmem>>, vector<8x128xf32>,
    %c0_i32_8 = arith.constant 0 : i32
    %9 = arith.cmpi eq, %arg2, %c0_i32_8 : i32
    %10 = arith.extui %9 : i1 to i32
    %c0_i32_9 = arith.constant 0 : i32
    %11 = arith.cmpi ne, %10, %c0_i32_9 : i32
    scf.if %11 {
      %c0_10 = arith.constant 0 : index
      %c0_11 = arith.constant 0 : index
      %12 = vector.load %arg7[%c0_10, %c0_11] : memref<8x128xf32, #tpu.memory_space<vmem>>, vector<8x128xf32>
      %cst_12 = arith.constant 0.000000e+00 : f32
      %13 = vector.broadcast %cst_12 : f32 to vector<8x128xf32>
      %14 = arith.maximumf %12, %13 : vector<8x128xf32>
      %15 = arith.truncf %14 : vector<8x128xf32> to vector<8x128xbf16>
      %c0_13 = arith.constant 0 : index
      %c0_14 = arith.constant 0 : index
      %16 = vector.load %arg6[%c0_13, %c0_14] : memref<8x128xbf16, #tpu.memory_space<vmem>>, vector<8x128xbf16>
      tpu.vector_store %arg6[%c0_13, %c0_14], %15 {strides = array<i32>} : memref<8x128xbf16, #tpu.memory_space<vmem>>, vector<8x128xbf16>,
    } else {
    }
    return
  }
  func.func @transform_0(%arg0: i32, %arg1: i32, %arg2: i32) -> (i32, i32) {
    %c0_i32 = arith.constant 0 : i32
    return %arg0, %arg2 : i32, i32
  }
  func.func @transform_1(%arg0: i32, %arg1: i32, %arg2: i32) -> (i32, i32) {
    %c0_i32 = arith.constant 0 : i32
    return %arg2, %arg1 : i32, i32
  }
  func.func @transform_2(%arg0: i32, %arg1: i32, %arg2: i32) -> (i32, i32) {
    %c0_i32 = arith.constant 0 : i32
    %c0_i32_0 = arith.constant 0 : i32
    return %c0_i32, %arg1 : i32, i32
  }
  func.func @transform_3(%arg0: i32, %arg1: i32, %arg2: i32) -> (i32, i32) {
    %c0_i32 = arith.constant 0 : i32
    return %arg0, %arg1 : i32, i32
  }
}

</mosaic_0001>

<llo_original>
// kernel: _pnn_forward.1
$region0: #{_pnn_forward.1}
  #allocation0 [shape = 'u32[]', space=smem, size = 0x4, offset = 0x4, fixed_abs, tag = 'smem constant byte address 0x4 - core index']
  #allocation1 [shape = 'u32[144,128]{1,0:T(1,128)}', space=vmem, size = 0x12000, scoped, tag = 'internal scratch']
  #allocation2 [shape = 'f32[8,128]{1,0:T(8,128)}', space=vmem, size = 0x1000, scoped, tag = 'scratch operand']
  %s0 = inlined_call_operand.hbm [shape: bf16[8,96], index: 0, kind: input, shape index: {}]
  %s1 = inlined_call_operand.hbm [shape: bf16[96,128], index: 1, kind: input, shape index: {}]
  %s2 = inlined_call_operand.hbm [shape: f32[1,128], index: 2, kind: input, shape index: {}]
  %s3 = inlined_call_operand.hbm [shape: bf16[8,128], index: 3, kind: output, shape index: {}]
  %s4 = sld [smem:[#allocation0]]
  $region42: #{_pnn_forward.1} parent=0
    _
  %s6 = ssub.s32 1, %s4
  %s7 = scalar_select 0, %s6, %s4
  $region1: #{_pnn_forward.1} parent=0
    #allocation3 [shape = 'u8[2048]{0}', space=vmem, size = 0x800, scoped, tag = 'input window, operand 0, single buffered']
    #allocation4 [shape = 's32[1]{0}', space=sflag, size = 0x4, scoped, tag = 'scoped memory for _pnn_forward.1']
    #allocation5 [shape = 's32[1]{0}', space=sflag, size = 0x4, scoped, tag = 'scoped memory for _pnn_forward.1']
    #allocation6 [shape = 'u8[24576]{0}', space=vmem, size = 0x6000, scoped, tag = 'input window, operand 1, single buffered']
    #allocation7 [shape = 's32[1]{0}', space=sflag, size = 0x4, scoped, tag = 'scoped memory for _pnn_forward.1']
    #allocation8 [shape = 'u8[512]{0}', space=vmem, size = 0x400, scoped, tag = 'input window, operand 2, single buffered']
    #allocation9 [shape = 'u8[2048]{0}', space=vmem, size = 0x800, scoped, tag = 'output window, operand 0, single buffered']
    %8 = vsyncpa [#allocation4], 0
    %9 = vsyncpa [#allocation7], 0
    %10 = vsyncpa [#allocation5], 0
    // Predicated region
    $region2: #{_pnn_forward.1} parent=1 // pred_check
      _
    $region3: #{_pnn_forward.1} parent=1 // pred_check_branch
      %12 = sbr.rel (0) target = $region5
    $region4: #{_pnn_forward.1} parent=1 // pred_region
      %s14 = ssub.s32 64, 64
      %15 = vsyncadd [#allocation4], %s14
      %s17 = sshll.u32 [#allocation3], 4
      %s18 = int_to_ptr.vmem [resolvable:$true] %s17
      %20 = dma.hbm_to_vmem [thread:$0]  %s0, 64, %s18, [#allocation4]
    $region5: #{_pnn_forward.1} parent=1 // pred_fallthru
      _
    // Predicated region
    $region6: #{_pnn_forward.1} parent=1 // pred_check
      _
    $region7: #{_pnn_forward.1} parent=1 // pred_check_branch
      %22 = sbr.rel (0) target = $region9
    $region8: #{_pnn_forward.1} parent=1 // pred_region
      %s24 = ssub.s32 768, 768
      %25 = vsyncadd [#allocation7], %s24
      %s26 = sshll.u32 [#allocation6], 4
      %s27 = int_to_ptr.vmem [resolvable:$true] %s26
      %32 = dma.hbm_to_vmem [thread:$0]  %s1, 768, %s27, [#allocation7], 64, 64, 4
    $region9: #{_pnn_forward.1} parent=1 // pred_fallthru
      _
    // Predicated region
    $region10: #{_pnn_forward.1} parent=1 // pred_check
      _
    $region11: #{_pnn_forward.1} parent=1 // pred_check_branch
      %34 = sbr.rel (0) target = $region13
    $region12: #{_pnn_forward.1} parent=1 // pred_region
      %s36 = ssub.s32 16, 16
      %37 = vsyncadd [#allocation7], %s36
      %s39 = sshll.u32 [#allocation8], 4
      %s40 = int_to_ptr.vmem [resolvable:$true] %s39
      %42 = dma.hbm_to_vmem [thread:$0]  %s2, 16, %s40, [#allocation7]
    $region13: #{_pnn_forward.1} parent=1 // pred_fallthru
      _
    // Predicated region
    $region14: #{_pnn_forward.1} parent=1 // pred_check
      _
    $region15: #{_pnn_forward.1} parent=1 // pred_check_branch
      %44 = sbr.rel (0) target = $region17
    $region16: #{_pnn_forward.1} parent=1 // pred_region
      %45 = dma.done [#allocation4], 64
    $region17: #{_pnn_forward.1} parent=1 // pred_fallthru
      _
    // Predicated region
    $region18: #{_pnn_forward.1} parent=1 // pred_check
      _
    $region19: #{_pnn_forward.1} parent=1 // pred_check_branch
      %47 = sbr.rel (0) target = $region21
    $region20: #{_pnn_forward.1} parent=1 // pred_region
      %48 = dma.done [#allocation7], 768
    $region21: #{_pnn_forward.1} parent=1 // pred_fallthru
      _
    // Predicated region
    $region22: #{_pnn_forward.1} parent=1 // pred_check
      _
    $region23: #{_pnn_forward.1} parent=1 // pred_check_branch
      %50 = sbr.rel (0) target = $region25
    $region24: #{_pnn_forward.1} parent=1 // pred_region
      %51 = dma.done [#allocation7], 16
    $region25: #{_pnn_forward.1} parent=1 // pred_fallthru
      _
    %p53 = scmp.eq.s32.totalorder 0, 0
    // Predicated region
    $region26: #{_pnn_forward.1} parent=1 // pred_check
      %p54 = pneg %p53
    $region27: #{_pnn_forward.1} parent=1 // pred_check_branch
      %56 = sbr.rel (%p54) target = $region29
    $region28: #{_pnn_forward.1} parent=1 // pred_region
      %v57 = vld [vmem:[#allocation8] sm:$0x1]
      %v59 = vlaneseq
      %v60 = vshrl.u32 %v59, 7
      %v61 = vsub.s32 0, %v60
      %v62 = vrot.slane %v57, %v61
      %64 = vst [vmem:[#allocation2] sm:$0xff] %v62
    $region29: #{_pnn_forward.1} parent=1 // pred_fallthru
      _
    %v65 = vld [vmem:[#allocation2] sm:$0xff]
    %v66 = vld [vmem:[#allocation3] sm:$0xf]
    %v67 = vld [vmem:[#allocation6] sm:$0xf]
    %v68 = vld [vmem:[#allocation6 + $0x4] sm:$0xf]
    %v69 = vld [vmem:[#allocation6 + $0x8] sm:$0xf]
    %v70 = vld [vmem:[#allocation6 + $0xc] sm:$0xf]
    %v71 = vld [vmem:[#allocation6 + $0x10] sm:$0xf]
    %v72 = vld [vmem:[#allocation6 + $0x14] sm:$0xf]
    %v73 = vld [vmem:[#allocation6 + $0x18] sm:$0xf]
    %v74 = vld [vmem:[#allocation6 + $0x1c] sm:$0xf]
    %v75 = vld [vmem:[#allocation6 + $0x20] sm:$0xf]
    %v76 = vld [vmem:[#allocation6 + $0x24] sm:$0xf]
    %v77 = vld [vmem:[#allocation6 + $0x28] sm:$0xf]
    %v78 = vld [vmem:[#allocation6 + $0x2c] sm:$0xf]
    %v91 = vunpack.c.l.b16 %v67
    %v92 = vunpack.c.l.b16 %v68
    %v93 = vunpack.c.l.b16 %v69
    %v94 = vunpack.c.l.b16 %v70
    %v95 = vunpack.c.l.b16 %v71
    %v96 = vunpack.c.l.b16 %v72
    %v97 = vunpack.c.l.b16 %v73
    %v98 = vunpack.c.l.b16 %v74
    %v99 = vunpack.c.l.b16 %v75
    %v100 = vunpack.c.l.b16 %v76
    %v101 = vunpack.c.l.b16 %v77
    %v102 = vunpack.c.l.b16 %v78
    %v103 = vpack.c.b16 %v92, %v91
    %v104 = vpack.c.b16 %v94, %v93
    %v105 = vpack.c.b16 %v96, %v95
    %v106 = vpack.c.b16 %v98, %v97
    %v107 = vpack.c.b16 %v100, %v99
    %v108 = vpack.c.b16 %v102, %v101
    %vm115 = vcmask 785408
    %v117 = vsel %vm115, %v66, 0
    %119 = vmatprep.subr.bf16.mxu0 0
    %120 = vmatpush1.bf16.msra.mxu0 %v103
    %121 = vmatprep.subr.bf16.mxu0 0
    %122 = vmatpush1.bf16.msra.mxu0 %v104
    %123 = vmatprep.subr.bf16.mxu0 0
    %124 = vmatpush1.bf16.msra.mxu0 %v105
    %125 = vmatprep.subr.bf16.mxu0 0
    %126 = vmatpush1.bf16.msra.mxu0 %v106
    %127 = vmatprep.subr.bf16.mxu0 0
    %128 = vmatpush1.bf16.msra.mxu0 %v107
    %129 = vmatprep.subr.bf16.mxu0 0
    %130 = vmatpush1.bf16.msra.mxu0 %v108
    %131 = vmatprep.subr.bf16.mxu0 0
    %132 = vmatpush1.bf16.msra.mxu0 0
    %133 = vmatprep.subr.bf16.mxu0 0
    %134 = vmatpush1.bf16.msra.mxu0 0
    %135 = vmatprep.subr.bf16.mxu0 0
    %136 = vmatpush1.bf16.msra.mxu0 0
    %137 = vmatprep.subr.bf16.mxu0 0
    %138 = vmatpush1.bf16.msra.mxu0 0
    %139 = vmatprep.subr.bf16.mxu0 0
    %140 = vmatpush1.bf16.msra.mxu0 0
    %141 = vmatprep.subr.bf16.mxu0 0
    %142 = vmatpush1.bf16.msra.mxu0 0
    %143 = vmatprep.subr.bf16.mxu0 0
    %144 = vmatpush1.bf16.msra.mxu0 0
    %145 = vmatprep.subr.bf16.mxu0 0
    %146 = vmatpush1.bf16.msra.mxu0 0
    %147 = vmatprep.subr.bf16.mxu0 0
    %148 = vmatpush1.bf16.msra.mxu0 0
    %149 = vmatprep.subr.bf16.mxu0 0
    %150 = vmatpush1.bf16.msra.mxu0 0
    %151 = vmatprep.mubr.bf16.mxu0 0
    %152 = vmatmul.mubr.bf16.gmra.mrb[0].mxu0 %v117
    %v153 = vpop.f32.mrb[0].mxu0
    %v154 = vadd.f32 0.0, %v153
    %v155 = vpop.f32.mrb[0].mxu0
    %v156 = vpop.f32.mrb[0].mxu0
    %v157 = vpop.f32.mrb[0].mxu0
    %158 = vdwg.mxu0
    %v159 = vadd.f32 %v65, %v154
    %160 = vst [vmem:[#allocation2] sm:$0xff] %v159
    // Predicated region
    $region30: #{_pnn_forward.1} parent=1 // pred_check
      %p161 = pneg %p53
    $region31: #{_pnn_forward.1} parent=1 // pred_check_branch
      %163 = sbr.rel (%p161) target = $region33
    $region32: #{_pnn_forward.1} parent=1 // pred_region
      %v164 = vld [vmem:[#allocation2] sm:$0xff]
      %v165 = vmax.f32 %v164, 0.0
      %v166 = vpack.c.bf16 %v165, %v165
      %167 = vst [vmem:[#allocation9] sm:$0xf] %v166
    $region33: #{_pnn_forward.1} parent=1 // pred_fallthru
      _
    // Predicated region
    $region34: #{_pnn_forward.1} parent=1 // pred_check
      _
    $region35: #{_pnn_forward.1} parent=1 // pred_check_branch
      %169 = sbr.rel (0) target = $region37
    $region36: #{_pnn_forward.1} parent=1 // pred_region
      %s171 = ssub.s32 64, 64
      %172 = vsyncadd [#allocation5], %s171
      %s174 = sshll.u32 [#allocation9], 4
      %s175 = int_to_ptr.vmem [resolvable:$true] %s174
      %177 = dma.vmem_to_hbm [thread:$0]  %s175, 64, %s3, [#allocation5]
    $region37: #{_pnn_forward.1} parent=1 // pred_fallthru
      _
    // Predicated region
    $region38: #{_pnn_forward.1} parent=1 // pred_check
      _
    $region39: #{_pnn_forward.1} parent=1 // pred_check_branch
      %179 = sbr.rel (0) target = $region41
    $region40: #{_pnn_forward.1} parent=1 // pred_region
      %180 = dma.done [#allocation5], 64
    $region41: #{_pnn_forward.1} parent=1 // pred_fallthru
      _
    %181 = vsyncpa [#allocation4], 1
    %182 = vsyncpa [#allocation7], 1
    %183 = vsyncpa [#allocation5], 1

</llo_original>
